<compile_context>
chip_gen: v5e
topology: v5e:2x2
jax: 0.10.0
libtpu: 0.0.40
codegen_flags: <defaults>
</compile_context>

<pallas_src>
import math
from functools import partial

import jax
import jax.numpy as jnp
from jax import lax
from jax.experimental import pallas as pl
from jax.experimental.pallas import tpu as pltpu


_GROUP = 8                  # rows per semaphore / per aggregate wait (HBM path)
_MAX_GROUPS_IN_FLIGHT = 8   # up to 64 row gathers in flight


def _round_up(x: int, m: int) -> int:
    return (x + m - 1) // m * m


def _cdiv(a: int, b: int) -> int:
    return (a + b - 1) // b


def _vmem_capacity_bytes() -> int:
    try:
        cap = int(pltpu.get_tpu_info().vmem_capacity_bytes)
        if cap > 0:
            return cap
    except Exception:
        pass
    return 64 * 1024 * 1024   # conservative fallback: v7x per-TC VMEM


# ---------------------------------------------------------------------------
# Path 1: table resident in VMEM, gather with in-VMEM dynamic row indexing.
# ---------------------------------------------------------------------------
def _embed_resident_kernel(ids_ref, table_ref, out_ref, *, tile: int, scale: float):
    """ids_ref: SMEM (n_pad,) i32 (scalar prefetch); table_ref: VMEM (vocab, embed),
    resident across grid steps; out_ref: VMEM (tile, embed)."""
    base = pl.program_id(0) * tile

    def copy_row(i, carry):
        row = ids_ref[base + i]
        out_ref[pl.ds(i, 1), :] = table_ref[pl.ds(row, 1), :]
        return carry

    # Static trip count -> unrolled scan keeps the scalar slots fed.
    lax.fori_loop(0, tile, copy_row, 0, unroll=8)

    # Scale in f32 (exact parity with the f32 reference even for bf16 tables);
    # one large lane/sublane-dense store.
    out_ref[...] = (out_ref[...].astype(jnp.float32) * scale).astype(out_ref.dtype)


# ---------------------------------------------------------------------------
# Path 2: table in HBM, per-row DMA gather directly into the output block.
# ---------------------------------------------------------------------------
def _embed_gather_kernel(ids_ref, table_hbm, out_ref, sems, *,
                         tile: int, depth: int, n_tok: int, scale: float):
    """ids_ref: SMEM (n_pad,) i32; table_hbm: HBM (vocab, embed) raw ref;
    out_ref: VMEM (tile, embed) output block (DMA destination); sems: (depth,) DMA sems."""
    base = pl.program_id(0) * tile
    n_grp = tile // _GROUP                               # static

    # Number of groups containing at least one real (non-padded) token.
    rem = n_tok - base
    act = jnp.clip((rem + _GROUP - 1) // _GROUP, 0, n_grp)

    def issue_group(g, rows=None):
        r0 = g * _GROUP
        for j in range(_GROUP):                          # static unroll
            row = ids_ref[base + r0 + j] if rows is None else rows[j]
            pltpu.make_async_copy(
                table_hbm.at[pl.ds(row, 1), :],
                out_ref.at[pl.ds(r0 + j, 1), :],          # gather straight into out block
                sems.at[g % depth],
            ).start()

    def wait_group(g):
        # Aggregate wait: one descriptor covering the group's total bytes
        # retires the _GROUP single-row copies that signalled this semaphore.
        r0 = g * _GROUP
        pltpu.make_async_copy(
            table_hbm.at[pl.ds(0, _GROUP), :],
            out_ref.at[pl.ds(r0, _GROUP), :],
            sems.at[g % depth],
        ).wait()

    # Prime the DMA ring (static unroll; guarded for short / tail tiles).
    for g in range(depth):
        @pl.when(g < act)
        def _(g=g):
            issue_group(g)

    # Steady state (branch-free).  Hoist the next group's SMEM id reads above
    # the wait (a DMA wait breaks SMEM sst->sld forwarding).
    steady = jnp.maximum(act - depth, 0)

    def steady_body(g, carry):
        nxt = g + depth
        r0 = nxt * _GROUP
        rows = [ids_ref[base + r0 + j] for j in range(_GROUP)]
        wait_group(g)
        issue_group(nxt, rows)
        return carry

    lax.fori_loop(0, steady, steady_body, 0)

    # Drain the last in-flight groups.
    def drain_body(g, carry):
        wait_group(g)
        return carry

    lax.fori_loop(steady, act, drain_body, 0)

    # Scale in place (f32 math), one large lane/sublane-dense store.  Rows of a
    # padded tail tile that were never gathered hold junk and are sliced off by
    # the wrapper.
    out_ref[...] = (out_ref[...].astype(jnp.float32) * scale).astype(out_ref.dtype)


# ---------------------------------------------------------------------------
# Wrapper
# ---------------------------------------------------------------------------
def embedding_forward(token_ids: jax.Array, table: jax.Array, *,
                      tile: int | None = None,
                      force_hbm_gather: bool = False) -> jax.Array:
    """token_ids: (batch, seq) int; table: (vocab, embed) -> (batch, seq, embed)."""
    batch, seq = token_ids.shape
    vocab, embed = table.shape
    itemsize = jnp.dtype(table.dtype).itemsize
    scale = math.sqrt(float(embed))
    n_tok = batch * seq

    capacity = _vmem_capacity_bytes()
    usable = (capacity * 3) // 4                     # leave compiler headroom

    table_bytes = vocab * embed * itemsize
    # Resident fast path if the (possibly double-buffered) table comfortably
    # fits VMEM on this generation (~16 MiB on v7x, ~32 MiB on v5e/v6e).
    resident = (not force_hbm_gather) and (table_bytes <= capacity // 4)
    table_vmem = 2 * table_bytes if resident else 0

    # --- Tile selection (generation-aware) ---------------------------------
    # Bigger default tile on 128 MiB-VMEM parts (v5e/v6e); the output block is
    # double-buffered, so cap it against the remaining VMEM budget (matters
    # for large embed on v7x's 64 MiB VMEM).
    tile_target = tile if tile is not None else (1024 if capacity >= (96 << 20) else 512)
    out_budget = max(usable - table_vmem, 2 * 8 * embed * itemsize)
    tile_cap = max(8, (out_budget // (2 * embed * itemsize)) // 8 * 8)
    # Keep >= 2 grid steps when possible so the "parallel" axis can shard
    # across v7x's two TensorCores.
    tile_split = _round_up(_cdiv(n_tok, 2), 8)
    tile = max(8, min(tile_target, tile_cap, tile_split))   # multiple of _GROUP (8)

    n_pad = _round_up(n_tok, tile)
    grid = (n_pad // tile,)

    # Pad ids with 0 (the padding_idx row); padded rows are sliced off below.
    # TODO(synk): for very large batch*seq, chunk the id prefetch (DMA a (tile,)
    # id window into SMEM per grid step) to bound the SMEM footprint.
    flat_ids = jnp.zeros((n_pad,), dtype=jnp.int32)
    flat_ids = flat_ids.at[:n_tok].set(token_ids.reshape(-1).astype(jnp.int32))

    out_bytes = 2 * tile * embed * itemsize          # double-buffered output block
    vmem_limit = int(min(capacity, max(16 << 20, out_bytes + table_vmem + (4 << 20))))

    compiler_params = pltpu.CompilerParams(
        dimension_semantics=("parallel",),           # disjoint output tiles -> megacore OK
        vmem_limit_bytes=vmem_limit,
    )
    out_shape = jax.ShapeDtypeStruct((n_pad, embed), table.dtype)
    out_spec = pl.BlockSpec((tile, embed), lambda i, ids: (i, 0))

    if resident:
        grid_spec = pltpu.PrefetchScalarGridSpec(
            num_scalar_prefetch=1,
            grid=grid,
            in_specs=[
                # Constant index map -> table DMA'd once, stays resident in VMEM.
                pl.BlockSpec((vocab, embed), lambda i, ids: (0, 0)),
            ],
            out_specs=out_spec,
        )
        kernel = partial(_embed_resident_kernel, tile=tile, scale=scale)
    else:
        row_bytes = embed * itemsize
        # Size the DMA ring by row bytes: keep >=16 rows (and >= ~256 KiB for
        # small rows) in flight to approach HBM roofline on v7x.
        rows_in_flight = int(min(_MAX_GROUPS_IN_FLIGHT * _GROUP,
                                 max(2 * _GROUP, (256 * 1024) // max(row_bytes, 1))))
        depth = max(1, min(rows_in_flight // _GROUP, tile // _GROUP))
        grid_spec = pltpu.PrefetchScalarGridSpec(
            num_scalar_prefetch=1,
            grid=grid,
            in_specs=[
                # Table stays in HBM; rows are gathered with manual async copies.
                pl.BlockSpec(memory_space=pl.ANY),
            ],
            out_specs=out_spec,
            scratch_shapes=[pltpu.SemaphoreType.DMA((depth,))],
        )
        kernel = partial(_embed_gather_kernel, tile=tile, depth=depth,
                         n_tok=n_tok, scale=scale)

    out_flat = pl.pallas_call(
        kernel,
        out_shape=out_shape,
        grid_spec=grid_spec,
        compiler_params=compiler_params,
    )(flat_ids, table)

    return out_flat[:n_tok].reshape(batch, seq, embed)


if __name__ == "__main__":
    vocab_size = 64
    embed_size = 128          # lane-friendly (multiple of 128)
    batch, seq = 2, 8

    key = jax.random.PRNGKey(0)
    k_w, k_x = jax.random.split(key)

    # nn.Embedding default init ~ N(0, 1); padding_idx=0 => row 0 zeroed.
    table = jax.random.normal(k_w, (vocab_size, embed_size), dtype=jnp.float32)
    table = table.at[0].set(0.0)

    token_ids = jax.random.randint(k_x, (batch, seq), 0, vocab_size, dtype=jnp.int32)
    token_ids = token_ids.at[0, 0].set(0)          # exercise padding_idx row

    ref = table[token_ids] * math.sqrt(float(embed_size))

    # Path 1: VMEM-resident table (default for this small vocab).
    out_fast = jax.block_until_ready(embedding_forward(token_ids, table))
    assert out_fast.shape == (batch, seq, embed_size)
    assert jnp.allclose(out_fast, ref, atol=1e-6), "resident path mismatch vs reference"
    assert jnp.all(out_fast[0, 0] == 0.0), "padding_idx row must stay zero"

    # Path 2: HBM gather path (forced, to validate the large-table code path).
    out_gather = jax.block_until_ready(
        embedding_forward(token_ids, table, force_hbm_gather=True))
    assert out_gather.shape == (batch, seq, embed_size)
    assert jnp.allclose(out_gather, ref, atol=1e-6), "gather path mismatch vs reference"
    assert jnp.all(out_gather[0, 0] == 0.0), "padding_idx row must stay zero"

    print("KERNEL_OK")
</pallas_src>

<mosaic_0001>
module attributes {stable_mosaic.version = 11 : i64} {
  func.func @_embed_resident_kernel(%arg0: i32, %arg1: memref<16xi32, #tpu.memory_space<smem>>, %arg2: memref<64x128xf32, #tpu.memory_space<vmem>>, %arg3: memref<8x128xf32, #tpu.memory_space<vmem>>) attributes {dimension_semantics = [#tpu.dimension_semantics<parallel>], iteration_bounds = array<i64: 2>, scalar_prefetch = 1 : i64, scratch_operands = 0 : i64, tpu.core_type = #tpu.core_type<tc>, window_params = [{pipeline_mode = #tpu.pipeline_mode<synchronous>, transform_indices = @transform_0, window_bounds = array<i64: 64, 128>}, {transform_indices = @transform_1, window_bounds = array<i64: 8, 128>}]} {
    %c8_i32 = arith.constant 8 : i32
    %0 = arith.muli %arg0, %c8_i32 : i32
    %c0_i32 = arith.constant 0 : i32
    %1 = arith.addi %0, %c0_i32 : i32
    %2 = arith.index_cast %1 : i32 to index
    %3 = memref.load %arg1[%2] : memref<16xi32, #tpu.memory_space<smem>>
    %4 = arith.index_cast %3 : i32 to index
    %c0 = arith.constant 0 : index
    %5 = vector.load %arg2[%4, %c0] : memref<64x128xf32, #tpu.memory_space<vmem>>, vector<1x128xf32>
    %6 = arith.index_cast %c0_i32 : i32 to index
    %c0_0 = arith.constant 0 : index
    %7 = vector.load %arg3[%6, %c0_0] : memref<8x128xf32, #tpu.memory_space<vmem>>, vector<1x128xf32>
    tpu.vector_store %arg3[%6, %c0_0], %5 {strides = array<i32>} : memref<8x128xf32, #tpu.memory_space<vmem>>, vector<1x128xf32>,
    %c1_i32 = arith.constant 1 : i32
    %8 = arith.addi %0, %c1_i32 : i32
    %9 = arith.index_cast %8 : i32 to index
    %10 = memref.load %arg1[%9] : memref<16xi32, #tpu.memory_space<smem>>
    %11 = arith.index_cast %10 : i32 to index
    %c0_1 = arith.constant 0 : index
    %12 = vector.load %arg2[%11, %c0_1] : memref<64x128xf32, #tpu.memory_space<vmem>>, vector<1x128xf32>
    %13 = arith.index_cast %c1_i32 : i32 to index
    %c0_2 = arith.constant 0 : index
    %14 = vector.load %arg3[%13, %c0_2] : memref<8x128xf32, #tpu.memory_space<vmem>>, vector<1x128xf32>
    tpu.vector_store %arg3[%13, %c0_2], %12 {strides = array<i32>} : memref<8x128xf32, #tpu.memory_space<vmem>>, vector<1x128xf32>,
    %c2_i32 = arith.constant 2 : i32
    %15 = arith.addi %0, %c2_i32 : i32
    %16 = arith.index_cast %15 : i32 to index
    %17 = memref.load %arg1[%16] : memref<16xi32, #tpu.memory_space<smem>>
    %18 = arith.index_cast %17 : i32 to index
    %c0_3 = arith.constant 0 : index
    %19 = vector.load %arg2[%18, %c0_3] : memref<64x128xf32, #tpu.memory_space<vmem>>, vector<1x128xf32>
    %20 = arith.index_cast %c2_i32 : i32 to index
    %c0_4 = arith.constant 0 : index
    %21 = vector.load %arg3[%20, %c0_4] : memref<8x128xf32, #tpu.memory_space<vmem>>, vector<1x128xf32>
    tpu.vector_store %arg3[%20, %c0_4], %19 {strides = array<i32>} : memref<8x128xf32, #tpu.memory_space<vmem>>, vector<1x128xf32>,
    %c3_i32 = arith.constant 3 : i32
    %22 = arith.addi %0, %c3_i32 : i32
    %23 = arith.index_cast %22 : i32 to index
    %24 = memref.load %arg1[%23] : memref<16xi32, #tpu.memory_space<smem>>
    %25 = arith.index_cast %24 : i32 to index
    %c0_5 = arith.constant 0 : index
    %26 = vector.load %arg2[%25, %c0_5] : memref<64x128xf32, #tpu.memory_space<vmem>>, vector<1x128xf32>
    %27 = arith.index_cast %c3_i32 : i32 to index
    %c0_6 = arith.constant 0 : index
    %28 = vector.load %arg3[%27, %c0_6] : memref<8x128xf32, #tpu.memory_space<vmem>>, vector<1x128xf32>
    tpu.vector_store %arg3[%27, %c0_6], %26 {strides = array<i32>} : memref<8x128xf32, #tpu.memory_space<vmem>>, vector<1x128xf32>,
    %c4_i32 = arith.constant 4 : i32
    %29 = arith.addi %0, %c4_i32 : i32
    %30 = arith.index_cast %29 : i32 to index
    %31 = memref.load %arg1[%30] : memref<16xi32, #tpu.memory_space<smem>>
    %32 = arith.index_cast %31 : i32 to index
    %c0_7 = arith.constant 0 : index
    %33 = vector.load %arg2[%32, %c0_7] : memref<64x128xf32, #tpu.memory_space<vmem>>, vector<1x128xf32>
    %34 = arith.index_cast %c4_i32 : i32 to index
    %c0_8 = arith.constant 0 : index
    %35 = vector.load %arg3[%34, %c0_8] : memref<8x128xf32, #tpu.memory_space<vmem>>, vector<1x128xf32>
    tpu.vector_store %arg3[%34, %c0_8], %33 {strides = array<i32>} : memref<8x128xf32, #tpu.memory_space<vmem>>, vector<1x128xf32>,
    %c5_i32 = arith.constant 5 : i32
    %36 = arith.addi %0, %c5_i32 : i32
    %37 = arith.index_cast %36 : i32 to index
    %38 = memref.load %arg1[%37] : memref<16xi32, #tpu.memory_space<smem>>
    %39 = arith.index_cast %38 : i32 to index
    %c0_9 = arith.constant 0 : index
    %40 = vector.load %arg2[%39, %c0_9] : memref<64x128xf32, #tpu.memory_space<vmem>>, vector<1x128xf32>
    %41 = arith.index_cast %c5_i32 : i32 to index
    %c0_10 = arith.constant 0 : index
    %42 = vector.load %arg3[%41, %c0_10] : memref<8x128xf32, #tpu.memory_space<vmem>>, vector<1x128xf32>
    tpu.vector_store %arg3[%41, %c0_10], %40 {strides = array<i32>} : memref<8x128xf32, #tpu.memory_space<vmem>>, vector<1x128xf32>,
    %c6_i32 = arith.constant 6 : i32
    %43 = arith.addi %0, %c6_i32 : i32
    %44 = arith.index_cast %43 : i32 to index
    %45 = memref.load %arg1[%44] : memref<16xi32, #tpu.memory_space<smem>>
    %46 = arith.index_cast %45 : i32 to index
    %c0_11 = arith.constant 0 : index
    %47 = vector.load %arg2[%46, %c0_11] : memref<64x128xf32, #tpu.memory_space<vmem>>, vector<1x128xf32>
    %48 = arith.index_cast %c6_i32 : i32 to index
    %c0_12 = arith.constant 0 : index
    %49 = vector.load %arg3[%48, %c0_12] : memref<8x128xf32, #tpu.memory_space<vmem>>, vector<1x128xf32>
    tpu.vector_store %arg3[%48, %c0_12], %47 {strides = array<i32>} : memref<8x128xf32, #tpu.memory_space<vmem>>, vector<1x128xf32>,
    %c7_i32 = arith.constant 7 : i32
    %50 = arith.addi %0, %c7_i32 : i32
    %51 = arith.index_cast %50 : i32 to index
    %52 = memref.load %arg1[%51] : memref<16xi32, #tpu.memory_space<smem>>
    %53 = arith.index_cast %52 : i32 to index
    %c0_13 = arith.constant 0 : index
    %54 = vector.load %arg2[%53, %c0_13] : memref<64x128xf32, #tpu.memory_space<vmem>>, vector<1x128xf32>
    %55 = arith.index_cast %c7_i32 : i32 to index
    %c0_14 = arith.constant 0 : index
    %56 = vector.load %arg3[%55, %c0_14] : memref<8x128xf32, #tpu.memory_space<vmem>>, vector<1x128xf32>
    tpu.vector_store %arg3[%55, %c0_14], %54 {strides = array<i32>} : memref<8x128xf32, #tpu.memory_space<vmem>>, vector<1x128xf32>,
    %c8_i32_15 = arith.constant 8 : i32
    %c0_16 = arith.constant 0 : index
    %c0_17 = arith.constant 0 : index
    %57 = vector.load %arg3[%c0_16, %c0_17] : memref<8x128xf32, #tpu.memory_space<vmem>>, vector<8x128xf32>
    %cst = arith.constant 11.3137083 : f32
    %58 = vector.broadcast %cst : f32 to vector<8x128xf32>
    %59 = arith.mulf %57, %58 : vector<8x128xf32>
    %c0_18 = arith.constant 0 : index
    %c0_19 = arith.constant 0 : index
    %60 = vector.load %arg3[%c0_18, %c0_19] : memref<8x128xf32, #tpu.memory_space<vmem>>, vector<8x128xf32>
    tpu.vector_store %arg3[%c0_18, %c0_19], %59 {strides = array<i32>} : memref<8x128xf32, #tpu.memory_space<vmem>>, vector<8x128xf32>,
    return
  }
  func.func @transform_0(%arg0: i32, %arg1: memref<16xi32, #tpu.memory_space<smem>>) -> (i32, i32) {
    %c0_i32 = arith.constant 0 : i32
    %c0_i32_0 = arith.constant 0 : i32
    %c0_i32_1 = arith.constant 0 : i32
    return %c0_i32, %c0_i32_0 : i32, i32
  }
  func.func @transform_1(%arg0: i32, %arg1: memref<16xi32, #tpu.memory_space<smem>>) -> (i32, i32) {
    %c0_i32 = arith.constant 0 : i32
    %c0_i32_0 = arith.constant 0 : i32
    return %arg0, %c0_i32 : i32, i32
  }
}

</mosaic_0001>

<llo_original>
// kernel: tpu_custom_call.1
$region0: #{tpu_custom_call.1}
  #allocation0 [shape = 'u32[]', space=smem, size = 0x4, offset = 0x4, fixed_abs, tag = 'smem constant byte address 0x4 - core index']
  #allocation1 [shape = 'u32[72,128]{1,0:T(1,128)}', space=vmem, size = 0x9000, scoped, tag = 'internal scratch']
  #allocation2 [shape = 's32[1]{0}', space=sflag, size = 0x4, scoped, tag = 'scoped memory for tpu_custom_call.1']
  #allocation3 [shape = 'u8[512]{0}', space=smem, size = 0x200, scoped, tag = 'prefetched SMEM operand 0']
  %s0 = inlined_call_operand.hbm [shape: s32[16], index: 0, kind: input, shape index: {}]
  %s1 = inlined_call_operand.hbm [shape: f32[64,128], index: 1, kind: input, shape index: {}]
  %s2 = inlined_call_operand.hbm [shape: f32[16,128], index: 2, kind: output, shape index: {}]
  %s3 = sld [smem:[#allocation0]]
  $region41: #{tpu_custom_call.1} parent=0
    _
  %s5 = ssub.s32 1, %s3
  %s6 = scalar_select 0, %s5, %s3
  %s8 = sshll.u32 %s0, 4
  %s9 = int_to_ptr.hbm [resolvable:$true] %s8
  %11 = dma.hbm_to_smem %s9, 16, [#allocation3], [#allocation2]
  %13 = dma.done [#allocation2], 16
  %14 = sfence
  $region1: #{tpu_custom_call.1} parent=0
    #allocation4 [shape = 'u8[32768]{0}', space=vmem, size = 0x8000, scoped, tag = 'input window, operand 1, single buffered']
    #allocation5 [shape = 's32[2]{0}', space=sflag, size = 0x8, scoped, tag = 'scoped memory for tpu_custom_call.1']
    #allocation6 [shape = 's32[2]{0}', space=sflag, size = 0x8, scoped, tag = 'scoped memory for tpu_custom_call.1']
    #allocation7 [shape = 'u8[8192]{0}', space=vmem, size = 0x2000, scoped, tag = 'output window, operand 0']
    %15 = vsyncpa [#allocation5], 0
    %16 = vsyncpa [#allocation6], 0
    %s17 = scalar_lea.sflag [#allocation6], 1
    %18 = vsyncpa %s17, 0
    loop: start=0, step=1, limit=4
    $region2: #{tpu_custom_call.1} parent=1 // loop_pre_header
      _
    $region3: #{tpu_custom_call.1} parent=1 // loop_header
      %s20 = sphi 0, %s24
      %p21 = scmp.ge.s32.totalorder %s20, 4
      %s28 = sphi 0, %s28
      %s30 = sphi 0, %s28
      %s31 = sphi 0, %s30
      %s45 = sphi 0, %s31
      %s51 = sphi 0, %s53
      %s54 = sphi 0, %s51
      %s55 = sphi 0, %s54
      %s71 = sphi 0, %s55
    $region4: #{tpu_custom_call.1} parent=1 // loop_header_branch
      %23 = sbr.rel (%p21) target = $region8
    $region5: #{tpu_custom_call.1} parent=1 // loop_body
      %s25 = ssub.s32 %s20, 1
      %s26 = ssub.s32 %s20, 2
      %s27 = sadd.s32 %s20, 1
      %s29 = sadd.s32 %s28, 1
      %p32 = scmp.eq.s32.totalorder %s20, 1
      %p33 = scmp.ne.s32.totalorder %s28, %s30
      %p34 = scmp.eq.s32.totalorder %s20, 0
      %p35 = por %p33, %p34
      %p36 = scmp.ne.s32.totalorder %s28, %s30
      %p37 = scmp.eq.s32.totalorder %s25, 1
      %p38 = por %p36, %p37
      %p39 = scmp.ne.s32.totalorder %s30, %s31
      %p40 = scmp.eq.s32.totalorder %s25, 0
      %p41 = por %p39, %p40
      %p42 = scmp.ne.s32.totalorder %s30, %s31
      %p43 = scmp.eq.s32.totalorder %s26, 1
      %p44 = por %p42, %p43
      %p46 = scmp.ne.s32.totalorder %s31, %s45
      %p47 = scmp.eq.s32.totalorder %s26, 0
      %p48 = por %p46, %p47
      %s49 = ssub.s32 %s20, %s27
      %p50 = scmp.eq.s32.totalorder %s49, 0
      %s52 = sadd.s32 %s51, 1
      %s53 = scalar_select %p50, %s51, %s52
      %p56 = pneg %p50
      %p57 = scmp.eq.s32.totalorder %s20, 1
      %p58 = por %p56, %p57
      %p59 = scmp.ne.s32.totalorder %s51, %s54
      %p60 = scmp.eq.s32.totalorder %s20, 0
      %p61 = por %p59, %p60
      %p62 = scmp.ne.s32.totalorder %s51, %s54
      %p63 = scmp.eq.s32.totalorder %s25, 1
      %p64 = por %p62, %p63
      %p65 = scmp.ne.s32.totalorder %s54, %s55
      %p66 = scmp.eq.s32.totalorder %s25, 0
      %p67 = por %p65, %p66
      %p68 = scmp.ne.s32.totalorder %s54, %s55
      %p69 = scmp.eq.s32.totalorder %s26, 1
      %p70 = por %p68, %p69
      %p72 = scmp.ne.s32.totalorder %s55, %s71
      %p73 = scmp.eq.s32.totalorder %s26, 0
      %p74 = por %p72, %p73
      %p75 = scmp.le.s32.totalorder 1, %s20
      %p76 = scmp.lt.s32.totalorder %s20, 3
      %p77 = pnand %p75, %p76
      %p78 = pneg %p77
      // Predicated region
      $region9: #{tpu_custom_call.1} parent=5 // pred_check
        _
      $region10: #{tpu_custom_call.1} parent=5 // pred_check_branch
        %80 = sbr.rel (%p77) target = $region12
      $region11: #{tpu_custom_call.1} parent=5 // pred_region
        %s81 = ssub.s32 %s20, 1
        // Predicated region
        $region13: #{tpu_custom_call.1} parent=11 // pred_check
          %p82 = pneg %p41
        $region14: #{tpu_custom_call.1} parent=11 // pred_check_branch
          %84 = sbr.rel (%p82) target = $region16
        $region15: #{tpu_custom_call.1} parent=11 // pred_region
          %86 = vsyncadd [#allocation5], 0
          %s87 = sshll.u32 %s1, 4
          %s88 = int_to_ptr.hbm [resolvable:$true] %s87
          %s89 = sshll.u32 [#allocation4], 4
          %s90 = int_to_ptr.vmem [resolvable:$true] %s89
          %95 = dma.hbm_to_vmem [thread:$0]  %s88, 1024, %s90, [#allocation5], 128, 128, 8
        $region16: #{tpu_custom_call.1} parent=11 // pred_fallthru
          _
      $region12: #{tpu_custom_call.1} parent=5 // pred_fallthru
        _
      %p96 = scmp.lt.s32.totalorder %s20, 2
      // Predicated region
      $region17: #{tpu_custom_call.1} parent=5 // pred_check
        %p97 = pneg %p96
      $region18: #{tpu_custom_call.1} parent=5 // pred_check_branch
        %99 = sbr.rel (%p97) target = $region20
      $region19: #{tpu_custom_call.1} parent=5 // pred_region
        _
      $region20: #{tpu_custom_call.1} parent=5 // pred_fallthru
        _
      %p100 = scmp.le.s32.totalorder 1, %s20
      %p101 = scmp.lt.s32.totalorder %s20, 3
      %p102 = pnand %p100, %p101
      %p103 = pneg %p102
      // Predicated region
      $region21: #{tpu_custom_call.1} parent=5 // pred_check
        _
      $region22: #{tpu_custom_call.1} parent=5 // pred_check_branch
        %105 = sbr.rel (%p102) target = $region24
      $region23: #{tpu_custom_call.1} parent=5 // pred_region
        %s106 = ssub.s32 %s20, 1
        // Predicated region
        $region25: #{tpu_custom_call.1} parent=23 // pred_check
          %p107 = pneg %p41
        $region26: #{tpu_custom_call.1} parent=23 // pred_check_branch
          %109 = sbr.rel (%p107) target = $region28
        $region27: #{tpu_custom_call.1} parent=23 // pred_region
          %111 = dma.done [#allocation5], 1024
        $region28: #{tpu_custom_call.1} parent=23 // pred_fallthru
          _
        %p112 = pneg %p41
        %p113 = pneg %p38
        %p114 = pneg %p67
        %p115 = pneg %p64
        %s116 = sand.u32 %s54, 1
        %s117 = scalar_lea.sflag [#allocation6], %s116
        %s118 = sand.u32 %s54, 1
        %s119 = smul.addr %s118, 8
        %s120 = scalar_lea.vmem [#allocation7], %s119
        %s121 = smul.u32 %s25, 8
        %s122 = sld [smem:[#allocation3 + %s121]]
        %s123 = scalar_lea.vmem [#allocation4], %s122
        %v124 = vld [vmem:[%s123] sm:$0x1]
        %125 = vst [vmem:[%s120] sm:$0x1] %v124
        %s126 = sadd.s32 %s121, 1
        %s127 = sld [smem:[#allocation3 + %s126]]
        %s128 = scalar_lea.vmem [#allocation4], %s127
        %v129 = vld [vmem:[%s128] sm:$0x1]
        %130 = vst [vmem:[%s120 + $0x1] sm:$0x1] %v129
        %s131 = sadd.s32 %s121, 2
        %s132 = sld [smem:[#allocation3 + %s131]]
        %s133 = scalar_lea.vmem [#allocation4], %s132
        %v134 = vld [vmem:[%s133] sm:$0x1]
        %135 = vst [vmem:[%s120 + $0x2] sm:$0x1] %v134
        %s136 = sadd.s32 %s121, 3
        %s137 = sld [smem:[#allocation3 + %s136]]
        %s138 = scalar_lea.vmem [#allocation4], %s137
        %v139 = vld [vmem:[%s138] sm:$0x1]
        %140 = vst [vmem:[%s120 + $0x3] sm:$0x1] %v139
        %s141 = sadd.s32 %s121, 4
        %s142 = sld [smem:[#allocation3 + %s141]]
        %s143 = scalar_lea.vmem [#allocation4], %s142
        %v144 = vld [vmem:[%s143] sm:$0x1]
        %145 = vst [vmem:[%s120 + $0x4] sm:$0x1] %v144
        %s146 = sadd.s32 %s121, 5
        %s147 = sld [smem:[#allocation3 + %s146]]
        %s148 = scalar_lea.vmem [#allocation4], %s147
        %v149 = vld [vmem:[%s148] sm:$0x1]
        %150 = vst [vmem:[%s120 + $0x5] sm:$0x1] %v149
        %s151 = sadd.s32 %s121, 6
        %s152 = sld [smem:[#allocation3 + %s151]]
        %s153 = scalar_lea.vmem [#allocation4], %s152
        %v154 = vld [vmem:[%s153] sm:$0x1]
        %155 = vst [vmem:[%s120 + $0x6] sm:$0x1] %v154
        %s156 = sadd.s32 %s121, 7
        %s157 = sld [smem:[#allocation3 + %s156]]
        %s158 = scalar_lea.vmem [#allocation4], %s157
        %v159 = vld [vmem:[%s158] sm:$0x1]
        %160 = vst [vmem:[%s120 + $0x7] sm:$0x1] %v159
        %v161 = vld [vmem:[%s120] sm:$0xff]
        %v162 = vmul.f32 %v161, 11.313708
        %163 = vst [vmem:[%s120] sm:$0xff] %v162
        %s164 = sand.u32 %s54, 1
        %s165 = scalar_lea.sflag [#allocation6], %s164
        %s166 = sand.u32 %s54, 1
        %s167 = smul.addr %s166, 8
        %s168 = scalar_lea.vmem [#allocation7], %s167
        // Predicated region
        $region29: #{tpu_custom_call.1} parent=23 // pred_check
          %p169 = pneg %p64
        $region30: #{tpu_custom_call.1} parent=23 // pred_check_branch
          %171 = sbr.rel (%p169) target = $region32
        $region31: #{tpu_custom_call.1} parent=23 // pred_region
          %173 = vsyncadd %s165, 0
          %s174 = smul.addr %s25, 8
          %s175 = scalar_lea.hbm %s2, %s174
          %s177 = sshll.u32 %s168, 4
          %s178 = int_to_ptr.vmem [resolvable:$true] %s177
          %s179 = sshll.u32 %s175, 4
          %s180 = int_to_ptr.hbm [resolvable:$true] %s179
          %182 = dma.vmem_to_hbm [thread:$0]  %s178, 128, %s180, %s165
        $region32: #{tpu_custom_call.1} parent=23 // pred_fallthru
          _
      $region24: #{tpu_custom_call.1} parent=5 // pred_fallthru
        _
      %p183 = scmp.le.s32.totalorder 2, %s20
      // Predicated region
      $region33: #{tpu_custom_call.1} parent=5 // pred_check
        %p184 = pneg %p183
      $region34: #{tpu_custom_call.1} parent=5 // pred_check_branch
        %186 = sbr.rel (%p184) target = $region36
      $region35: #{tpu_custom_call.1} parent=5 // pred_region
        %s187 = ssub.s32 %s20, 2
        // Predicated region
        $region37: #{tpu_custom_call.1} parent=35 // pred_check
          %p188 = pneg %p70
        $region38: #{tpu_custom_call.1} parent=35 // pred_check_branch
          %190 = sbr.rel (%p188) target = $region40
        $region39: #{tpu_custom_call.1} parent=35 // pred_region
          %s191 = sand.u32 %s55, 1
          %s192 = scalar_lea.sflag [#allocation6], %s191
          %s193 = sand.u32 %s55, 1
          %s194 = smul.addr %s193, 8
          %s195 = scalar_lea.vmem [#allocation7], %s194
          %197 = dma.done %s192, 128
        $region40: #{tpu_custom_call.1} parent=35 // pred_fallthru
          _
      $region36: #{tpu_custom_call.1} parent=5 // pred_fallthru
        _
    $region6: #{tpu_custom_call.1} parent=1 // loop_footer
      %s24 = sadd.s32 1, %s20
    $region7: #{tpu_custom_call.1} parent=1 // loop_footer_branch
      %19 = sbr.rel target = $region3
    $region8: #{tpu_custom_call.1} parent=1 // loop_exit
      _
    %198 = vsyncpa [#allocation5], 1
    %s199 = scalar_lea.sflag [#allocation5], 1
    %200 = vsyncpa %s199, 1
    %201 = vsyncpa [#allocation6], 1
    %s202 = scalar_lea.sflag [#allocation6], 1
    %203 = vsyncpa %s202, 1

</llo_original>
